<compile_context>
chip_gen: v7x
topology: tpu7x:2x2x1
jax: 0.10.0
libtpu: 0.0.40
codegen_flags: <defaults>
</compile_context>

<pallas_src>
import functools
from enum import Enum

import jax
import jax.numpy as jnp
from jax.experimental import pallas as pl
from jax.experimental.pallas import tpu as pltpu


class NonlinearityType(Enum):
    RELU = "relu"
    GELU = "gelu"
    SWISH = "swish"
    TANH = "tanh"
    SIGMOID = "sigmoid"
    LEAKY_RELU = "leaky_relu"
    ELU = "elu"


_LANE = 128
_SUBLANE = 8
_TARGET_BLOCK_BYTES = 2 * 1024 * 1024  # per-buffer tile; x2 in + x2 out stays well under v7x budget


def _apply_nonlinearity(x, kind: NonlinearityType):
    """Elementwise activation (matches the PyTorch module semantics)."""
    if kind == NonlinearityType.RELU:
        return jnp.maximum(x, 0.0)
    elif kind == NonlinearityType.GELU:
        # F.gelu default is the exact (erf-based) GELU.
        inv_sqrt2 = jnp.float32(0.7071067811865476)
        return 0.5 * x * (1.0 + jax.lax.erf(x * inv_sqrt2))
    elif kind == NonlinearityType.SWISH:
        return x * jax.nn.sigmoid(x)
    elif kind == NonlinearityType.TANH:
        return jnp.tanh(x)
    elif kind == NonlinearityType.SIGMOID:
        return jax.nn.sigmoid(x)
    elif kind == NonlinearityType.LEAKY_RELU:
        # F.leaky_relu default negative_slope = 0.01
        return jnp.where(x >= 0, x, 0.01 * x)
    elif kind == NonlinearityType.ELU:
        # F.elu default alpha = 1.0
        return jnp.where(x > 0, x, jnp.expm1(x))
    else:
        inv_sqrt2 = jnp.float32(0.7071067811865476)
        return 0.5 * x * (1.0 + jax.lax.erf(x * inv_sqrt2))


def _nonlinearity_kernel(x_ref, o_ref, *, kind: NonlinearityType):
    # Compute in f32 (accuracy for sub-32-bit inputs); I/O stays in input dtype.
    x = x_ref[...].astype(jnp.float32)
    o_ref[...] = _apply_nonlinearity(x, kind).astype(o_ref.dtype)


def _choose_layout(shape, itemsize):
    """Pick a zero-copy 2-D [rows, cols] view and a legal block_rows."""
    total = 1
    for d in shape:
        total *= int(d)

    # Fast path: wide lane-dense slab (last dim a large multiple of 128).
    cols = None
    for cand in (16 * _LANE, 8 * _LANE, 4 * _LANE, 2 * _LANE, _LANE):
        if total % cand == 0:
            cols = cand
            break
    if cols is None:
        # Ragged fallback: trailing dim as the (full) lane dim -> always legal,
        # still no pad/copy.  Less lane-dense, but only hit for odd shapes.
        cols = int(shape[-1]) if len(shape) >= 1 else 1
        cols = max(cols, 1)
    rows = total // cols

    # Block rows: ~2 MiB per buffer; multiple of 8 (or the full rows extent)
    # to satisfy the (8,128)-or-full-dim BlockSpec rule.
    cap_rows = max(_SUBLANE, _TARGET_BLOCK_BYTES // max(cols * itemsize, 1))
    if rows <= cap_rows:
        block_rows = rows
    else:
        block_rows = max(_SUBLANE, (cap_rows // _SUBLANE) * _SUBLANE)

    # Prefer >=2 grid steps so v7x's two TensorCores both get work.
    if block_rows == rows and rows >= 2 * _SUBLANE and rows % (2 * _SUBLANE) == 0:
        block_rows = rows // 2

    return rows, cols, block_rows


def flexible_nonlinearity(x, nonlinearity_type: NonlinearityType = NonlinearityType.GELU):
    """Apply FlexibleNonlinearity.forward via a Pallas TPU kernel."""
    orig_shape = x.shape
    dtype = x.dtype
    total = x.size
    if total == 0:
        return x

    rows, cols, block_rows = _choose_layout(orig_shape, jnp.dtype(dtype).itemsize)
    slab = x.reshape(rows, cols)  # metadata-only reshape; no pad, no slice

    grid = (pl.cdiv(rows, block_rows),)
    kernel = functools.partial(_nonlinearity_kernel, kind=nonlinearity_type)

    out_slab = pl.pallas_call(
        kernel,
        out_shape=jax.ShapeDtypeStruct((rows, cols), dtype),
        grid=grid,
        in_specs=[pl.BlockSpec((block_rows, cols), lambda i: (i, 0))],
        out_specs=pl.BlockSpec((block_rows, cols), lambda i: (i, 0)),
        compiler_params=pltpu.CompilerParams(
            dimension_semantics=("parallel",),
            vmem_limit_bytes=32 * 1024 * 1024,  # explicit budget, safe on v7x's 64 MiB VMEM
        ),
    )(slab)

    return out_slab.reshape(orig_shape)


def _reference(x, kind: NonlinearityType):
    return _apply_nonlinearity(x.astype(jnp.float32), kind).astype(x.dtype)


if __name__ == "__main__":
    key = jax.random.PRNGKey(0)
    # NCHW input consistent with a conv-style feature map (fast, 128-aligned path).
    x = jax.random.normal(key, (2, 4, 16, 16), dtype=jnp.float32)
    # A deliberately non-128-aligned shape to exercise the zero-copy ragged path.
    x_ragged = jax.random.normal(jax.random.PRNGKey(1), (2, 3, 5, 7), dtype=jnp.float32)

    ok = True
    for kind in NonlinearityType:
        for inp in (x, x_ragged):
            y = flexible_nonlinearity(inp, kind)
            jax.block_until_ready(y)
            y_ref = _reference(inp, kind)
            if y.shape != inp.shape or not jnp.allclose(y, y_ref, atol=1e-5, rtol=1e-5):
                ok = False
                print(f"MISMATCH for {kind} shape {inp.shape}")

    # Default path (GELU) once more, block on it.
    y_default = flexible_nonlinearity(x)
    jax.block_until_ready(y_default)

    if ok:
        print("KERNEL_OK")
</pallas_src>

<mosaic_0001>
module attributes {stable_mosaic.version = 11 : i64} {
  func.func @_nonlinearity_kernel(%arg0: i32, %arg1: memref<1x2048xf32, #tpu.memory_space<vmem>>, %arg2: memref<1x2048xf32, #tpu.memory_space<vmem>>) attributes {dimension_semantics = [#tpu.dimension_semantics<parallel>], iteration_bounds = array<i64: 1>, scalar_prefetch = 0 : i64, scratch_operands = 0 : i64, tpu.core_type = #tpu.core_type<tc>, window_params = [{transform_indices = @transform_0, window_bounds = array<i64: 1, 2048>}, {transform_indices = @transform_1, window_bounds = array<i64: 1, 2048>}]} {
    %c0 = arith.constant 0 : index
    %c0_0 = arith.constant 0 : index
    %0 = vector.load %arg1[%c0, %c0_0] : memref<1x2048xf32, #tpu.memory_space<vmem>>, vector<1x2048xf32>
    %cst = arith.constant 0.000000e+00 : f32
    %1 = vector.broadcast %cst : f32 to vector<1x2048xf32>
    %2 = arith.maximumf %0, %1 : vector<1x2048xf32>
    %c0_1 = arith.constant 0 : index
    %c0_2 = arith.constant 0 : index
    %3 = vector.load %arg2[%c0_1, %c0_2] : memref<1x2048xf32, #tpu.memory_space<vmem>>, vector<1x2048xf32>
    tpu.vector_store %arg2[%c0_1, %c0_2], %2 {strides = array<i32>} : memref<1x2048xf32, #tpu.memory_space<vmem>>, vector<1x2048xf32>,
    return
  }
  func.func @transform_0(%arg0: i32) -> (i32, i32) {
    %c0_i32 = arith.constant 0 : i32
    %c0_i32_0 = arith.constant 0 : i32
    return %arg0, %c0_i32 : i32, i32
  }
  func.func @transform_1(%arg0: i32) -> (i32, i32) {
    %c0_i32 = arith.constant 0 : i32
    %c0_i32_0 = arith.constant 0 : i32
    return %arg0, %c0_i32 : i32, i32
  }
}

</mosaic_0001>

<llo_original>
// kernel: tpu_custom_call.1
$region0: #{tpu_custom_call.1}
  #allocation0 [shape = 'u32[]', space=smem, size = 0x4, offset = 0x4, fixed_abs, tag = 'smem constant byte address 0x4 - core index']
  #allocation1 [shape = 'u32[144,128]{1,0:T(1,128)}', space=vmem, size = 0x12000, scoped, tag = 'internal scratch']
  %s0 = inlined_call_operand.hbm [shape: f32[1,2048], index: 0, kind: input, shape index: {}]
  %s1 = inlined_call_operand.hbm [shape: f32[1,2048], index: 1, kind: output, shape index: {}]
  %s2 = sld [smem:[#allocation0]]
  $region18: #{tpu_custom_call.1} parent=0
    _
  %s4 = ssub.s32 1, %s2
  %s5 = scalar_select 0, %s4, %s2
  $region1: #{tpu_custom_call.1} parent=0
    #allocation2 [shape = 'u8[8192]{0}', space=vmem, size = 0x2000, scoped, tag = 'input window, operand 0, single buffered']
    #allocation3 [shape = 's32[1]{0}', space=sflag, size = 0x4, scoped, tag = 'scoped memory for tpu_custom_call.1']
    #allocation4 [shape = 's32[1]{0}', space=sflag, size = 0x4, scoped, tag = 'scoped memory for tpu_custom_call.1']
    #allocation5 [shape = 'u8[8192]{0}', space=vmem, size = 0x2000, scoped, tag = 'output window, operand 0, single buffered']
    %6 = vsyncpa [#allocation3], 0
    %7 = vsyncpa [#allocation4], 0
    // Predicated region
    $region2: #{tpu_custom_call.1} parent=1 // pred_check
      _
    $region3: #{tpu_custom_call.1} parent=1 // pred_check_branch
      %9 = sbr.rel (0) target = $region5
    $region4: #{tpu_custom_call.1} parent=1 // pred_region
      %s11 = ssub.s32 256, 256
      %12 = vsyncadd [#allocation3], %s11
      %s14 = sshll.u32 [#allocation2], 4
      %s15 = int_to_ptr.vmem [resolvable:$true] %s14
      %17 = dma.hbm_to_vmem [thread:$0]  %s0, 256, %s15, [#allocation3]
    $region5: #{tpu_custom_call.1} parent=1 // pred_fallthru
      _
    // Predicated region
    $region6: #{tpu_custom_call.1} parent=1 // pred_check
      _
    $region7: #{tpu_custom_call.1} parent=1 // pred_check_branch
      %19 = sbr.rel (0) target = $region9
    $region8: #{tpu_custom_call.1} parent=1 // pred_region
      %20 = dma.done [#allocation3], 256
    $region9: #{tpu_custom_call.1} parent=1 // pred_fallthru
      _
    %v21 = vld [vmem:[#allocation2] sm:$0xff]
    %v22 = vld [vmem:[#allocation2 + $0x8] sm:$0xff]
    %v23 = vmax.f32 %v21, 0.0
    %v24 = vmax.f32 %v22, 0.0
    %25 = vst [vmem:[#allocation5] sm:$0xff] %v23
    %26 = vst [vmem:[#allocation5 + $0x8] sm:$0xff] %v24
    // Predicated region
    $region10: #{tpu_custom_call.1} parent=1 // pred_check
      _
    $region11: #{tpu_custom_call.1} parent=1 // pred_check_branch
      %28 = sbr.rel (0) target = $region13
    $region12: #{tpu_custom_call.1} parent=1 // pred_region
      %s30 = ssub.s32 256, 256
      %31 = vsyncadd [#allocation4], %s30
      %s33 = sshll.u32 [#allocation5], 4
      %s34 = int_to_ptr.vmem [resolvable:$true] %s33
      %36 = dma.vmem_to_hbm [thread:$0]  %s34, 256, %s1, [#allocation4]
    $region13: #{tpu_custom_call.1} parent=1 // pred_fallthru
      _
    // Predicated region
    $region14: #{tpu_custom_call.1} parent=1 // pred_check
      _
    $region15: #{tpu_custom_call.1} parent=1 // pred_check_branch
      %38 = sbr.rel (0) target = $region17
    $region16: #{tpu_custom_call.1} parent=1 // pred_region
      %39 = dma.done [#allocation4], 256
    $region17: #{tpu_custom_call.1} parent=1 // pred_fallthru
      _
    %40 = vsyncpa [#allocation3], 1
    %41 = vsyncpa [#allocation4], 1

</llo_original>
